<compile_context>
chip_gen: v7x
topology: tpu7x:2x2x1
jax: 0.10.0
libtpu: 0.0.40
codegen_flags: <defaults>
</compile_context>

<pallas_src>
import jax
import jax.numpy as jnp
from jax import lax
from jax.experimental import pallas as pl
from jax.experimental.pallas import tpu as pltpu


# ---------------------------------------------------------------------------
# Phase 1: EMA update + sampling + column-hit reduction (accumulator output).
# ---------------------------------------------------------------------------
def _stn_sample_kernel(std_ref, nrows_ref, x_ref, activ_ref, rexp_ref,
                       activ_out_ref, hit_ref):
    i = pl.program_id(0)
    n, d = x_ref.shape

    x = x_ref[...]
    activ = 0.97 * activ_ref[...] + 0.03 * jnp.abs(x)
    activ_out_ref[...] = activ

    col_ids = lax.broadcasted_iota(jnp.int32, (n, d), 1)

    # Multinomial weights. Row-rescaled for numerical stability (categorical
    # distribution is invariant to a positive per-row scale):
    #   ac = exp(-5*activ); s = sum(ac); weights = ac with column 0 := 99*s
    a5 = 5.0 * activ
    ac = jnp.exp(jnp.min(a5, axis=1, keepdims=True) - a5)     # values in (0, 1]
    s = jnp.sum(ac, axis=1, keepdims=True)                    # >= 1 (sum BEFORE overwrite)
    w = jnp.where(col_ids == 0, 99.0 * s, ac)

    # One categorical sample per row via the exponential race:
    #   r = argmax_j  w_j / E_j,  E_j ~ Exp(1).  rexp = 1/E precomputed in wrapper.
    # Same distribution as torch.multinomial(w, 1); RNG stream necessarily differs.
    scores = w * rexp_ref[...]
    m = jnp.max(scores, axis=1, keepdims=True)
    r = jnp.min(jnp.where(scores >= m, col_ids, d), axis=1, keepdims=True)  # (n, 1)

    # Drop column-0 samples (no noise) and samples from padded rows.
    row_ids = i * n + lax.broadcasted_iota(jnp.int32, (n, 1), 0)
    valid = (row_ids < nrows_ref[0]) & (r > 0)
    r = jnp.where(valid, r, -1)

    tile_hit = jnp.max((col_ids == r).astype(jnp.float32), axis=0, keepdims=True)

    @pl.when(i == 0)
    def _():
        hit_ref[...] = tile_hit

    @pl.when(i > 0)
    def _():
        hit_ref[...] = jnp.maximum(hit_ref[...], tile_hit)

    # Pre-scale by std so the apply pass is a single add.
    @pl.when(i == pl.num_programs(0) - 1)
    def _():
        hit_ref[...] = hit_ref[...] * std_ref[0]


# ---------------------------------------------------------------------------
# Phase 2: elementwise apply of the (already std-scaled) column mask.
# ---------------------------------------------------------------------------
def _stn_apply_kernel(x_ref, hit_ref, out_ref):
    out_ref[...] = x_ref[...] + hit_ref[...].astype(out_ref.dtype)


def _round_up(a, b):
    return (a + b - 1) // b * b


def _pick_row_tile(n_rows, d):
    # ~14 live f32 (row_tile, D) slabs (double-buffered inputs/outputs + temporaries);
    # budget ~20 MiB so everything fits v7x's 32 MiB default scoped VMEM.
    budget = 20 * 1024 * 1024
    cap = budget // max(1, d * 4 * 14)
    cap = max(8, min(512, (cap // 8) * 8))
    return min(cap, _round_up(n_rows, 8))


def stn_forward(x, std, activ, key):
    """x, activ: (B, C, D) float32; std: scalar; key: jax PRNG key."""
    B, C, D = x.shape
    N = B * C
    row_tile = _pick_row_tile(N, D)
    n_pad = _round_up(N, row_tile)
    grid = (n_pad // row_tile,)

    x2 = x.reshape(N, D).astype(jnp.float32)
    activ2 = activ.reshape(N, D).astype(jnp.float32)
    if n_pad != N:
        pad = ((0, n_pad - N), (0, 0))
        x2 = jnp.pad(x2, pad)
        activ2 = jnp.pad(activ2, pad)

    # Exponential-race noise, one Exp(1) sample per (row, column): rexp = 1/E.
    # TODO(synk): in-kernel pltpu.prng_seed/prng_random_bits is unsupported in the CPU
    # interpreter, so the noise is generated with jax.random in the wrapper instead.
    u = jax.random.uniform(key, (n_pad, D), dtype=jnp.float32,
                           minval=1e-7, maxval=1.0)
    rexp = 1.0 / (-jnp.log(u))

    std_arr = jnp.asarray([std], dtype=jnp.float32)
    nrows_arr = jnp.asarray([N], dtype=jnp.int32)

    vmem_limit = 32 * 1024 * 1024

    activ_new, hit = pl.pallas_call(
        _stn_sample_kernel,
        grid=grid,
        out_shape=(
            jax.ShapeDtypeStruct((n_pad, D), jnp.float32),   # updated activ
            jax.ShapeDtypeStruct((1, D), jnp.float32),       # std-scaled column mask
        ),
        in_specs=[
            pl.BlockSpec(memory_space=pltpu.MemorySpace.SMEM),   # std
            pl.BlockSpec(memory_space=pltpu.MemorySpace.SMEM),   # n_rows
            pl.BlockSpec((row_tile, D), lambda i: (i, 0)),       # x
            pl.BlockSpec((row_tile, D), lambda i: (i, 0)),       # activ
            pl.BlockSpec((row_tile, D), lambda i: (i, 0)),       # rexp noise
        ],
        out_specs=(
            pl.BlockSpec((row_tile, D), lambda i: (i, 0)),       # activ_new (per tile)
            pl.BlockSpec((1, D), lambda i: (0, 0)),              # hit (resident accumulator)
        ),
        input_output_aliases={3: 0},   # update activ in place
        compiler_params=pltpu.CompilerParams(
            dimension_semantics=("arbitrary",),
            vmem_limit_bytes=vmem_limit),
    )(std_arr, nrows_arr, x2, activ2, rexp)

    out = pl.pallas_call(
        _stn_apply_kernel,
        grid=grid,
        out_shape=jax.ShapeDtypeStruct((n_pad, D), x.dtype),
        in_specs=[
            pl.BlockSpec((row_tile, D), lambda i: (i, 0)),
            pl.BlockSpec((1, D), lambda i: (0, 0)),
        ],
        out_specs=pl.BlockSpec((row_tile, D), lambda i: (i, 0)),
        compiler_params=pltpu.CompilerParams(
            dimension_semantics=("parallel",),   # megacore-shards the apply pass (v7x)
            vmem_limit_bytes=vmem_limit),
    )(x2, hit)

    out = out[:N].reshape(B, C, D)
    activ_new = activ_new[:N].reshape(B, C, D)
    return out, activ_new


_stn_forward_jit = jax.jit(stn_forward)


class StraightThroughNormal:
    """Stateful wrapper mirroring the nn.Module buffer `activ`."""

    def __init__(self):
        # PyTorch's randn(1) init buffer is discarded on first call anyway
        # (shape mismatch -> zeros_like(x)).
        self.activ = None
        self._step = 0

    def __call__(self, x, std):
        if self.activ is None or self.activ.shape != x.shape:
            self.activ = jnp.zeros(x.shape, dtype=jnp.float32)
        key = jax.random.PRNGKey(self._step)
        out, new_activ = _stn_forward_jit(x, std, self.activ, key)
        self.activ = new_activ
        self._step += 1
        return out


if __name__ == "__main__":
    key = jax.random.PRNGKey(0)
    # x is 3-D: STNFunction sums over dim 2 and flattens dims 0,1.
    B, C, D = 2, 4, 128
    x = jax.random.normal(key, (B, C, D), dtype=jnp.float32)
    std = 0.1

    module = StraightThroughNormal()
    out = module(x, std)
    out = jax.block_until_ready(out)
    activ = jax.block_until_ready(module.activ)

    assert out.shape == x.shape and out.dtype == x.dtype
    assert activ.shape == x.shape

    # EMA check: activ == 0.03*|x| on the first call.
    assert bool(jnp.max(jnp.abs(activ - 0.03 * jnp.abs(x))) < 1e-5)

    # Output check: per column, delta is either 0 or std, identical across rows,
    # and column 0 never gets noise.
    delta = (out - x).reshape(B * C, D)
    assert bool(jnp.all((jnp.abs(delta) < 1e-5) | (jnp.abs(delta - std) < 1e-5)))
    assert bool(jnp.all(jnp.abs(delta - delta[0:1]) < 1e-5))
    assert bool(jnp.all(jnp.abs(delta[:, 0]) < 1e-5))

    print("KERNEL_OK")
</pallas_src>

<mosaic_0001>
module attributes {stable_mosaic.version = 11 : i64} {
  func.func @_stn_sample_kernel(%arg0: i32, %arg1: memref<1xf32, #tpu.memory_space<smem>>, %arg2: memref<1xi32, #tpu.memory_space<smem>>, %arg3: memref<8x128xf32, #tpu.memory_space<vmem>>, %arg4: memref<8x128xf32, #tpu.memory_space<vmem>>, %arg5: memref<8x128xf32, #tpu.memory_space<vmem>>, %arg6: memref<8x128xf32, #tpu.memory_space<vmem>>, %arg7: memref<1x128xf32, #tpu.memory_space<vmem>>) attributes {dimension_semantics = [#tpu.dimension_semantics<arbitrary>], iteration_bounds = array<i64: 1>, scalar_prefetch = 0 : i64, scratch_operands = 0 : i64, tpu.core_type = #tpu.core_type<tc>, window_params = [{transform_indices = @transform_0, window_bounds = array<i64: 1>}, {transform_indices = @transform_1, window_bounds = array<i64: 1>}, {transform_indices = @transform_2, window_bounds = array<i64: 8, 128>}, {transform_indices = @transform_3, window_bounds = array<i64: 8, 128>}, {transform_indices = @transform_4, window_bounds = array<i64: 8, 128>}, {transform_indices = @transform_5, window_bounds = array<i64: 8, 128>}, {pipeline_mode = #tpu.pipeline_mode<synchronous>, transform_indices = @transform_6, window_bounds = array<i64: 1, 128>}]} {
    %c0 = arith.constant 0 : index
    %c0_0 = arith.constant 0 : index
    %0 = vector.load %arg3[%c0, %c0_0] : memref<8x128xf32, #tpu.memory_space<vmem>>, vector<8x128xf32>
    %c0_1 = arith.constant 0 : index
    %c0_2 = arith.constant 0 : index
    %1 = vector.load %arg4[%c0_1, %c0_2] : memref<8x128xf32, #tpu.memory_space<vmem>>, vector<8x128xf32>
    %cst = arith.constant 9.700000e-01 : f32
    %2 = vector.broadcast %cst : f32 to vector<8x128xf32>
    %3 = arith.mulf %2, %1 : vector<8x128xf32>
    %4 = math.absf %0 : vector<8x128xf32>
    %cst_3 = arith.constant 3.000000e-02 : f32
    %5 = vector.broadcast %cst_3 : f32 to vector<8x128xf32>
    %6 = arith.mulf %5, %4 : vector<8x128xf32>
    %7 = arith.addf %3, %6 : vector<8x128xf32>
    %c0_4 = arith.constant 0 : index
    %c0_5 = arith.constant 0 : index
    %8 = vector.load %arg6[%c0_4, %c0_5] : memref<8x128xf32, #tpu.memory_space<vmem>>, vector<8x128xf32>
    tpu.vector_store %arg6[%c0_4, %c0_5], %7 {strides = array<i32>} : memref<8x128xf32, #tpu.memory_space<vmem>>, vector<8x128xf32>,
    %9 = tpu.iota {dimensions = array<i32: 1>} : vector<8x128xi32>
    %cst_6 = arith.constant 5.000000e+00 : f32
    %10 = vector.broadcast %cst_6 : f32 to vector<8x128xf32>
    %11 = arith.mulf %10, %7 : vector<8x128xf32>
    %cst_7 = arith.constant dense<0x7F800000> : vector<8xf32>
    %12 = vector.multi_reduction <minimumf>, %11, %cst_7 [1] : vector<8x128xf32> to vector<8xf32>
    %13 = vector.shape_cast %12 : vector<8xf32> to vector<8x1xf32>
    %14 = vector.broadcast %13 : vector<8x1xf32> to vector<8x128xf32>
    %15 = arith.subf %14, %11 : vector<8x128xf32>
    %16 = math.exp %15 : vector<8x128xf32>
    %cst_8 = arith.constant dense<0.000000e+00> : vector<8xf32>
    %17 = vector.multi_reduction <add>, %16, %cst_8 [1] : vector<8x128xf32> to vector<8xf32>
    %18 = vector.shape_cast %17 : vector<8xf32> to vector<8x1xf32>
    %c0_i32 = arith.constant 0 : i32
    %19 = vector.broadcast %c0_i32 : i32 to vector<8x128xi32>
    %20 = arith.cmpi eq, %9, %19 : vector<8x128xi32>
    %cst_9 = arith.constant 9.900000e+01 : f32
    %21 = vector.broadcast %cst_9 : f32 to vector<8x1xf32>
    %22 = arith.mulf %21, %18 : vector<8x1xf32>
    %23 = vector.shape_cast %22 : vector<8x1xf32> to vector<8x1xf32>
    %24 = vector.broadcast %23 : vector<8x1xf32> to vector<8x128xf32>
    %25 = arith.select %20, %24, %16 : vector<8x128xi1>, vector<8x128xf32>
    %c0_10 = arith.constant 0 : index
    %c0_11 = arith.constant 0 : index
    %26 = vector.load %arg5[%c0_10, %c0_11] : memref<8x128xf32, #tpu.memory_space<vmem>>, vector<8x128xf32>
    %27 = arith.mulf %25, %26 : vector<8x128xf32>
    %cst_12 = arith.constant dense<0xFF800000> : vector<8xf32>
    %28 = vector.multi_reduction <maximumf>, %27, %cst_12 [1] : vector<8x128xf32> to vector<8xf32>
    %29 = vector.shape_cast %28 : vector<8xf32> to vector<8x1xf32>
    %30 = vector.broadcast %29 : vector<8x1xf32> to vector<8x128xf32>
    %31 = arith.cmpf oge, %27, %30 : vector<8x128xf32>
    %c128_i32 = arith.constant 128 : i32
    %32 = vector.broadcast %c128_i32 : i32 to vector<8x128xi32>
    %33 = arith.select %31, %9, %32 : vector<8x128xi1>, vector<8x128xi32>
    %cst_13 = arith.constant dense<2147483647> : vector<8xi32>
    %34 = vector.multi_reduction <minsi>, %33, %cst_13 [1] : vector<8x128xi32> to vector<8xi32>
    %35 = vector.shape_cast %34 : vector<8xi32> to vector<8x1xi32>
    %c8_i32 = arith.constant 8 : i32
    %36 = arith.muli %arg0, %c8_i32 : i32
    %37 = tpu.iota {dimensions = array<i32: 0>} : vector<8x1xi32>
    %38 = vector.broadcast %36 : i32 to vector<8x1xi32>
    %39 = arith.addi %38, %37 : vector<8x1xi32>
    %c0_14 = arith.constant 0 : index
    %40 = memref.load %arg2[%c0_14] : memref<1xi32, #tpu.memory_space<smem>>
    %41 = vector.broadcast %40 : i32 to vector<8x1xi32>
    %42 = arith.cmpi slt, %39, %41 : vector<8x1xi32>
    %c0_i32_15 = arith.constant 0 : i32
    %43 = vector.broadcast %c0_i32_15 : i32 to vector<8x1xi32>
    %44 = arith.cmpi sgt, %35, %43 : vector<8x1xi32>
    %45 = arith.andi %42, %44 : vector<8x1xi1>
    %c-1_i32 = arith.constant -1 : i32
    %46 = vector.broadcast %c-1_i32 : i32 to vector<8x1xi32>
    %47 = arith.select %45, %35, %46 : vector<8x1xi1>, vector<8x1xi32>
    %48 = vector.broadcast %47 : vector<8x1xi32> to vector<8x128xi32>
    %49 = arith.cmpi eq, %9, %48 : vector<8x128xi32>
    %50 = arith.extui %49 : vector<8x128xi1> to vector<8x128xi32>
    %51 = arith.sitofp %50 : vector<8x128xi32> to vector<8x128xf32>
    %cst_16 = arith.constant dense<0xFF800000> : vector<128xf32>
    %52 = vector.multi_reduction <maximumf>, %51, %cst_16 [0] : vector<8x128xf32> to vector<128xf32>
    %53 = vector.shape_cast %52 : vector<128xf32> to vector<1x128xf32>
    %c0_i32_17 = arith.constant 0 : i32
    %54 = arith.cmpi eq, %arg0, %c0_i32_17 : i32
    %55 = arith.extui %54 : i1 to i32
    %c0_i32_18 = arith.constant 0 : i32
    %56 = arith.cmpi ne, %55, %c0_i32_18 : i32
    scf.if %56 {
      %c0_23 = arith.constant 0 : index
      %c0_24 = arith.constant 0 : index
      %63 = vector.load %arg7[%c0_23, %c0_24] : memref<1x128xf32, #tpu.memory_space<vmem>>, vector<1x128xf32>
      tpu.vector_store %arg7[%c0_23, %c0_24], %53 {strides = array<i32>} : memref<1x128xf32, #tpu.memory_space<vmem>>, vector<1x128xf32>,
    } else {
    }
    %c0_i32_19 = arith.constant 0 : i32
    %57 = arith.cmpi sgt, %arg0, %c0_i32_19 : i32
    %58 = arith.extui %57 : i1 to i32
    %c0_i32_20 = arith.constant 0 : i32
    %59 = arith.cmpi ne, %58, %c0_i32_20 : i32
    scf.if %59 {
      %c0_23 = arith.constant 0 : index
      %c0_24 = arith.constant 0 : index
      %63 = vector.load %arg7[%c0_23, %c0_24] : memref<1x128xf32, #tpu.memory_space<vmem>>, vector<1x128xf32>
      %64 = arith.maximumf %63, %53 : vector<1x128xf32>
      %c0_25 = arith.constant 0 : index
      %c0_26 = arith.constant 0 : index
      %65 = vector.load %arg7[%c0_25, %c0_26] : memref<1x128xf32, #tpu.memory_space<vmem>>, vector<1x128xf32>
      tpu.vector_store %arg7[%c0_25, %c0_26], %64 {strides = array<i32>} : memref<1x128xf32, #tpu.memory_space<vmem>>, vector<1x128xf32>,
    } else {
    }
    %c0_i32_21 = arith.constant 0 : i32
    %60 = arith.cmpi eq, %arg0, %c0_i32_21 : i32
    %61 = arith.extui %60 : i1 to i32
    %c0_i32_22 = arith.constant 0 : i32
    %62 = arith.cmpi ne, %61, %c0_i32_22 : i32
    scf.if %62 {
      %c0_23 = arith.constant 0 : index
      %c0_24 = arith.constant 0 : index
      %63 = vector.load %arg7[%c0_23, %c0_24] : memref<1x128xf32, #tpu.memory_space<vmem>>, vector<1x128xf32>
      %c0_25 = arith.constant 0 : index
      %64 = memref.load %arg1[%c0_25] : memref<1xf32, #tpu.memory_space<smem>>
      %65 = vector.broadcast %64 : f32 to vector<1x128xf32>
      %66 = arith.mulf %63, %65 : vector<1x128xf32>
      %c0_26 = arith.constant 0 : index
      %c0_27 = arith.constant 0 : index
      %67 = vector.load %arg7[%c0_26, %c0_27] : memref<1x128xf32, #tpu.memory_space<vmem>>, vector<1x128xf32>
      tpu.vector_store %arg7[%c0_26, %c0_27], %66 {strides = array<i32>} : memref<1x128xf32, #tpu.memory_space<vmem>>, vector<1x128xf32>,
    } else {
    }
    return
  }
  func.func @transform_0(%arg0: i32) -> i32 {
    %c0_i32 = arith.constant 0 : i32
    %c0_i32_0 = arith.constant 0 : i32
    return %c0_i32 : i32
  }
  func.func @transform_1(%arg0: i32) -> i32 {
    %c0_i32 = arith.constant 0 : i32
    %c0_i32_0 = arith.constant 0 : i32
    return %c0_i32 : i32
  }
  func.func @transform_2(%arg0: i32) -> (i32, i32) {
    %c0_i32 = arith.constant 0 : i32
    %c0_i32_0 = arith.constant 0 : i32
    return %arg0, %c0_i32 : i32, i32
  }
  func.func @transform_3(%arg0: i32) -> (i32, i32) {
    %c0_i32 = arith.constant 0 : i32
    %c0_i32_0 = arith.constant 0 : i32
    return %arg0, %c0_i32 : i32, i32
  }
  func.func @transform_4(%arg0: i32) -> (i32, i32) {
    %c0_i32 = arith.constant 0 : i32
    %c0_i32_0 = arith.constant 0 : i32
    return %arg0, %c0_i32 : i32, i32
  }
  func.func @transform_5(%arg0: i32) -> (i32, i32) {
    %c0_i32 = arith.constant 0 : i32
    %c0_i32_0 = arith.constant 0 : i32
    return %arg0, %c0_i32 : i32, i32
  }
  func.func @transform_6(%arg0: i32) -> (i32, i32) {
    %c0_i32 = arith.constant 0 : i32
    %c0_i32_0 = arith.constant 0 : i32
    %c0_i32_1 = arith.constant 0 : i32
    return %c0_i32, %c0_i32_0 : i32, i32
  }
}

module attributes {stable_mosaic.version = 11 : i64} {
  func.func @_stn_apply_kernel(%arg0: i32, %arg1: memref<8x128xf32, #tpu.memory_space<vmem>>, %arg2: memref<1x128xf32, #tpu.memory_space<vmem>>, %arg3: memref<8x128xf32, #tpu.memory_space<vmem>>) attributes {dimension_semantics = [#tpu.dimension_semantics<parallel>], iteration_bounds = array<i64: 1>, scalar_prefetch = 0 : i64, scratch_operands = 0 : i64, tpu.core_type = #tpu.core_type<tc>, window_params = [{transform_indices = @transform_0, window_bounds = array<i64: 8, 128>}, {pipeline_mode = #tpu.pipeline_mode<synchronous>, transform_indices = @transform_1, window_bounds = array<i64: 1, 128>}, {transform_indices = @transform_2, window_bounds = array<i64: 8, 128>}]} {
    %c0 = arith.constant 0 : index
    %c0_0 = arith.constant 0 : index
    %0 = vector.load %arg1[%c0, %c0_0] : memref<8x128xf32, #tpu.memory_space<vmem>>, vector<8x128xf32>
    %c0_1 = arith.constant 0 : index
    %c0_2 = arith.constant 0 : index
    %1 = vector.load %arg2[%c0_1, %c0_2] : memref<1x128xf32, #tpu.memory_space<vmem>>, vector<1x128xf32>
    %2 = vector.broadcast %1 : vector<1x128xf32> to vector<8x128xf32>
    %3 = arith.addf %0, %2 : vector<8x128xf32>
    %c0_3 = arith.constant 0 : index
    %c0_4 = arith.constant 0 : index
    %4 = vector.load %arg3[%c0_3, %c0_4] : memref<8x128xf32, #tpu.memory_space<vmem>>, vector<8x128xf32>
    tpu.vector_store %arg3[%c0_3, %c0_4], %3 {strides = array<i32>} : memref<8x128xf32, #tpu.memory_space<vmem>>, vector<8x128xf32>,
    return
  }
  func.func @transform_0(%arg0: i32) -> (i32, i32) {
    %c0_i32 = arith.constant 0 : i32
    %c0_i32_0 = arith.constant 0 : i32
    return %arg0, %c0_i32 : i32, i32
  }
  func.func @transform_1(%arg0: i32) -> (i32, i32) {
    %c0_i32 = arith.constant 0 : i32
    %c0_i32_0 = arith.constant 0 : i32
    %c0_i32_1 = arith.constant 0 : i32
    return %c0_i32, %c0_i32_0 : i32, i32
  }
  func.func @transform_2(%arg0: i32) -> (i32, i32) {
    %c0_i32 = arith.constant 0 : i32
    %c0_i32_0 = arith.constant 0 : i32
    return %arg0, %c0_i32 : i32, i32
  }
}

</mosaic_0001>

<llo_original>
// kernel: stn_forward.2
$region0: #{stn_forward.2}
  #allocation0 [shape = 'u32[]', space=smem, size = 0x4, offset = 0x4, fixed_abs, tag = 'smem constant byte address 0x4 - core index']
  #allocation1 [shape = 'u32[144,128]{1,0:T(1,128)}', space=vmem, size = 0x12000, scoped, tag = 'internal scratch']
  #allocation2 [shape = 'f32[1]{0:T(128)S(6)}', space=smem, size = 0x200, scoped, tag = 'scoped memory for stn_forward.2']
  #allocation3 [shape = 's32[1]{0:T(128)S(6)}', space=smem, size = 0x200, scoped, tag = 'scoped memory for stn_forward.2']
  %s0 = inlined_call_operand.<no memory space> [shape: f32[1], index: 0, kind: input, shape index: {}]
  %s1 = inlined_call_operand.<no memory space> [shape: s32[1], index: 1, kind: input, shape index: {}]
  %s2 = inlined_call_operand.vmem [shape: f32[8,128], index: 2, kind: input, shape index: {}]
  %s3 = inlined_call_operand.vmem [shape: f32[8,128], index: 3, kind: input, shape index: {}, may-alias: {3,5}]
  %s4 = inlined_call_operand.vmem [shape: f32[8,128], index: 4, kind: input, shape index: {}]
  %s5 = inlined_call_operand.vmem [shape: f32[8,128], index: 5, kind: output, shape index: {0}, may-alias: {3,5}]
  %s6 = inlined_call_operand.vmem [shape: f32[1,128], index: 6, kind: output, shape index: {1}]
  %7 = xla_tuple %s5, %s6
  %s8 = sld [smem:[#allocation0]]
  $region50: #{stn_forward.2} parent=0
    _
  %s10 = ssub.s32 1, %s8
  %s11 = scalar_select 0, %s10, %s8
  %12 = sst [smem:[#allocation2]] %s0
  %13 = sst [smem:[#allocation3]] %s1
  // Predicated region
  $region2: #{stn_forward.2} parent=0 // pred_check
    _
  $region3: #{stn_forward.2} parent=0 // pred_check_branch
    %15 = sbr.rel (0) target = $region5
  $region4: #{stn_forward.2} parent=0 // pred_region
    _
  $region5: #{stn_forward.2} parent=0 // pred_fallthru
    _
  // Predicated region
  $region6: #{stn_forward.2} parent=0 // pred_check
    _
  $region7: #{stn_forward.2} parent=0 // pred_check_branch
    %17 = sbr.rel (0) target = $region9
  $region8: #{stn_forward.2} parent=0 // pred_region
    _
  $region9: #{stn_forward.2} parent=0 // pred_fallthru
    _
  // Predicated region
  $region10: #{stn_forward.2} parent=0 // pred_check
    _
  $region11: #{stn_forward.2} parent=0 // pred_check_branch
    %19 = sbr.rel (0) target = $region13
  $region12: #{stn_forward.2} parent=0 // pred_region
    _
  $region13: #{stn_forward.2} parent=0 // pred_fallthru
    _
  // Predicated region
  $region14: #{stn_forward.2} parent=0 // pred_check
    _
  $region15: #{stn_forward.2} parent=0 // pred_check_branch
    %21 = sbr.rel (0) target = $region17
  $region16: #{stn_forward.2} parent=0 // pred_region
    _
  $region17: #{stn_forward.2} parent=0 // pred_fallthru
    _
  // Predicated region
  $region18: #{stn_forward.2} parent=0 // pred_check
    _
  $region19: #{stn_forward.2} parent=0 // pred_check_branch
    %23 = sbr.rel (0) target = $region21
  $region20: #{stn_forward.2} parent=0 // pred_region
    _
  $region21: #{stn_forward.2} parent=0 // pred_fallthru
    _
  %v24 = vld [vmem:[%s2] sm:$0xff]
  %v25 = vld [vmem:[%s3] sm:$0xff]
  %v26 = vmul.f32 %v25, 0.97
  %v27 = vand.u32 2147483647, %v24
  %v28 = vmul.f32 %v27, 0.03
  %v29 = vadd.f32 %v26, %v28
  %30 = vst [vmem:[%s5] sm:$0xff] %v29
  %v31 = vlaneseq
  %v32 = vand.u32 %v31, 127
  %v33 = vmul.f32 %v29, 5.0
  %34 = vmin.xlane.f32.xlu0 %v33
  %v35 = vpop.xlane.xlu0 %34
  %v36 = vsub.f32 %v35, %v33
  %v37 = vmul.f32 %v36, 1.442695
  %v38 = vpow.pop %v37
  %39 = vadd.xlane.f32.xlu0 %v38
  %v40 = vpop.xlane.xlu0 %39
  %vm41 = vcmp.eq.s32.totalorder %v32, 0
  %v42 = vmul.f32 %v40, 99.0
  %v43 = vsel %vm41, %v42, %v38
  %v44 = vld [vmem:[%s4] sm:$0xff]
  %v45 = vmul.f32 %v43, %v44
  %46 = vmax.xlane.f32.xlu0 %v45
  %v47 = vpop.xlane.xlu0 %46
  %vm48 = vcmp.ge.f32.partialorder %v45, %v47
  %v49 = vsel %vm48, %v32, 128
  %v50 = vand.u32 %v49, 65535
  %v51 = vshra.s32 %v49, 16
  %v52 = vcvt.s32.f32 %v50
  %v53 = vcvt.s32.f32 %v51
  %54 = vmin.xlane.f32.xlu0 %v53
  %v55 = vpop.xlane.xlu0 %54
  %vm56 = vcmp.eq.f32.partialorder %v53, %v55
  %v57 = vsel %vm56, %v52, inf
  %58 = vmin.xlane.f32.xlu0 %v57
  %v59 = vpop.xlane.xlu0 %58
  %v60 = vcvt.f32.s32 %v59
  %v61 = vcvt.f32.s32 %v55
  %v62 = vshll.u32 %v61, 16
  %v63 = vadd.s32 %v62, %v60
  %s64 = smul.u32 0, 8
  %v65 = vlaneseq
  %v66 = vshrl.u32 %v65, 7
  %v67 = vstv %s64
  %v68 = vadd.s32 %v67, %v66
  %s69 = sld [smem:[#allocation3]]
  %v70 = vstv %s69
  %vm71 = vcmp.lt.s32.totalorder %v68, %v70
  %vm72 = vcmp.gt.s32.totalorder %v63, 0
  %vm73 = vmand %vm71, %vm72
  %v74 = vsel %vm73, %v63, 4294967295
  %vm75 = vcmp.eq.s32.totalorder %v32, %v74
  %v76 = vsel %vm75, 1, 0
  %v77 = vcvt.s32.f32 %v76
  %v78 = vrot.slane %v77, 4
  %v79 = vmax.f32 %v77, %v78
  %v80 = vrot.slane %v79, 2
  %v81 = vmax.f32 %v79, %v80
  %v82 = vrot.slane %v81, 1
  %v83 = vmax.f32 %v81, %v82
  %p84 = scmp.eq.s32.totalorder 0, 0
  // Predicated region
  $region22: #{stn_forward.2} parent=0 // pred_check
    %p85 = pneg %p84
  $region23: #{stn_forward.2} parent=0 // pred_check_branch
    %87 = sbr.rel (%p85) target = $region25
  $region24: #{stn_forward.2} parent=0 // pred_region
    %88 = vst [vmem:[%s6] sm:$0x1] %v83
  $region25: #{stn_forward.2} parent=0 // pred_fallthru
    _
  %p89 = scmp.gt.s32.totalorder 0, 0
  // Predicated region
  $region26: #{stn_forward.2} parent=0 // pred_check
    %p90 = pneg %p89
  $region27: #{stn_forward.2} parent=0 // pred_check_branch
    %92 = sbr.rel (%p90) target = $region29
  $region28: #{stn_forward.2} parent=0 // pred_region
    %v93 = vld [vmem:[%s6] sm:$0x1]
    %v94 = vmax.f32 %v93, %v83
    %95 = vst [vmem:[%s6] sm:$0x1] %v94
  $region29: #{stn_forward.2} parent=0 // pred_fallthru
    _
  // Predicated region
  $region30: #{stn_forward.2} parent=0 // pred_check
    %p96 = pneg %p84
  $region31: #{stn_forward.2} parent=0 // pred_check_branch
    %98 = sbr.rel (%p96) target = $region33
  $region32: #{stn_forward.2} parent=0 // pred_region
    %v99 = vld [vmem:[%s6] sm:$0x1]
    %s100 = sld [smem:[#allocation2]]
    %v101 = vstv %s100
    %v102 = vmul.f32 %v99, %v101
    %103 = vst [vmem:[%s6] sm:$0x1] %v102
  $region33: #{stn_forward.2} parent=0 // pred_fallthru
    _
  // Predicated region
  $region34: #{stn_forward.2} parent=0 // pred_check
    _
  $region35: #{stn_forward.2} parent=0 // pred_check_branch
    %105 = sbr.rel (0) target = $region37
  $region36: #{stn_forward.2} parent=0 // pred_region
    _
  $region37: #{stn_forward.2} parent=0 // pred_fallthru
    _
  // Predicated region
  $region38: #{stn_forward.2} parent=0 // pred_check
    _
  $region39: #{stn_forward.2} parent=0 // pred_check_branch
    %107 = sbr.rel (0) target = $region41
  $region40: #{stn_forward.2} parent=0 // pred_region
    _
  $region41: #{stn_forward.2} parent=0 // pred_fallthru
    _
  // Predicated region
  $region42: #{stn_forward.2} parent=0 // pred_check
    _
  $region43: #{stn_forward.2} parent=0 // pred_check_branch
    %109 = sbr.rel (0) target = $region45
  $region44: #{stn_forward.2} parent=0 // pred_region
    _
  $region45: #{stn_forward.2} parent=0 // pred_fallthru
    _
  // Predicated region
  $region46: #{stn_forward.2} parent=0 // pred_check
    _
  $region47: #{stn_forward.2} parent=0 // pred_check_branch
    %111 = sbr.rel (0) target = $region49
  $region48: #{stn_forward.2} parent=0 // pred_region
    _
  $region49: #{stn_forward.2} parent=0 // pred_fallthru
    _

// kernel: stn_forward.3
$region0: #{stn_forward.3}
  #allocation0 [shape = 'u32[]', space=smem, size = 0x4, offset = 0x4, fixed_abs, tag = 'smem constant byte address 0x4 - core index']
  #allocation1 [shape = 'u32[144,128]{1,0:T(1,128)}', space=vmem, size = 0x12000, scoped, tag = 'internal scratch']
  %s0 = inlined_call_operand.vmem [shape: f32[8,128], index: 0, kind: input, shape index: {}]
  %s1 = inlined_call_operand.vmem [shape: f32[1,128], index: 1, kind: input, shape index: {}]
  %s2 = inlined_call_operand.hbm [shape: f32[8,128], index: 2, kind: output, shape index: {}]
  %s3 = sld [smem:[#allocation0]]
  $region18: #{stn_forward.3} parent=0
    _
  %s5 = ssub.s32 1, %s3
  %s6 = scalar_select 0, %s5, %s3
  $region1: #{stn_forward.3} parent=0
    #allocation2 [shape = 'u8[4096]{0}', space=vmem, size = 0x1000, scoped, tag = 'output window, operand 0, single buffered']
    #allocation3 [shape = 's32[1]{0}', space=sflag, size = 0x4, scoped, tag = 'scoped memory for stn_forward.3']
    %7 = vsyncpa [#allocation3], 0
    // Predicated region
    $region2: #{stn_forward.3} parent=1 // pred_check
      _
    $region3: #{stn_forward.3} parent=1 // pred_check_branch
      %9 = sbr.rel (0) target = $region5
    $region4: #{stn_forward.3} parent=1 // pred_region
      _
    $region5: #{stn_forward.3} parent=1 // pred_fallthru
      _
    // Predicated region
    $region6: #{stn_forward.3} parent=1 // pred_check
      _
    $region7: #{stn_forward.3} parent=1 // pred_check_branch
      %11 = sbr.rel (0) target = $region9
    $region8: #{stn_forward.3} parent=1 // pred_region
      _
    $region9: #{stn_forward.3} parent=1 // pred_fallthru
      _
    %v12 = vld [vmem:[%s0] sm:$0xff]
    %v13 = vld [vmem:[%s1] sm:$0x1]
    %v15 = vlaneseq
    %v16 = vshrl.u32 %v15, 7
    %v17 = vsub.s32 0, %v16
    %v18 = vrot.slane %v13, %v17
    %v20 = vadd.f32 %v12, %v18
    %21 = vst [vmem:[#allocation2] sm:$0xff] %v20
    // Predicated region
    $region10: #{stn_forward.3} parent=1 // pred_check
      _
    $region11: #{stn_forward.3} parent=1 // pred_check_branch
      %23 = sbr.rel (0) target = $region13
    $region12: #{stn_forward.3} parent=1 // pred_region
      %s25 = ssub.s32 128, 128
      %26 = vsyncadd [#allocation3], %s25
      %s28 = sshll.u32 [#allocation2], 4
      %s29 = int_to_ptr.vmem [resolvable:$true] %s28
      %31 = dma.vmem_to_hbm [thread:$0]  %s29, 128, %s2, [#allocation3]
    $region13: #{stn_forward.3} parent=1 // pred_fallthru
      _
    // Predicated region
    $region14: #{stn_forward.3} parent=1 // pred_check
      _
    $region15: #{stn_forward.3} parent=1 // pred_check_branch
      %33 = sbr.rel (0) target = $region17
    $region16: #{stn_forward.3} parent=1 // pred_region
      %34 = dma.done [#allocation3], 128
    $region17: #{stn_forward.3} parent=1 // pred_fallthru
      _
    %35 = vsyncpa [#allocation3], 1

</llo_original>
